<compile_context>
chip_gen: v7x
topology: tpu7x:2x2x1
jax: 0.10.0
libtpu: 0.0.40
codegen_flags: <defaults>
</compile_context>

<pallas_src>
import functools

import jax
import jax.numpy as jnp
from jax.experimental import pallas as pl
from jax.experimental.pallas import tpu as pltpu


def _se_kernel(x_ref, w1_ref, b1_ref, w2_ref, b2_ref, o_ref, *, use_mxu):
    # x_ref block: (NB, HW, C) -- spatial on sublanes, channels on lanes.

    # --- squeeze: global average pool over the spatial (sublane) axis ---
    s = jnp.mean(x_ref[...].astype(jnp.float32), axis=1)            # (NB, C)

    # --- excitation: FC -> ReLU -> FC -> Sigmoid ---
    if use_mxu:
        h = jnp.dot(s, w1_ref[...], preferred_element_type=jnp.float32)
        h = jnp.maximum(h + b1_ref[...], 0.0)                        # (NB, Cr)
        g = jnp.dot(h, w2_ref[...], preferred_element_type=jnp.float32)
        g = g + b2_ref[...]                                          # (NB, C)
    else:
        # Tiny C/Cr: keep the matmuls off the MXU (VPU multiply + sublane
        # reduce); VPU/XLU/EUP slots are otherwise idle in this mem-bound
        # kernel, so the whole excitation becomes free filler.
        w1 = w1_ref[...].astype(jnp.float32)
        w2 = w2_ref[...].astype(jnp.float32)
        h = jnp.sum(s[:, :, None] * w1[None, :, :], axis=1) + b1_ref[...]
        h = jnp.maximum(h, 0.0)                                      # (NB, Cr)
        g = jnp.sum(h[:, :, None] * w2[None, :, :], axis=1) + b2_ref[...]
    g = jax.nn.sigmoid(g)                                            # (NB, C), EUP

    # --- scale: broadcast the channel gate along the spatial sublanes ---
    # Re-read x_ref here instead of reusing a Python value from the pool pass.
    o_ref[...] = (x_ref[...].astype(jnp.float32) * g[:, None, :]).astype(o_ref.dtype)


def _vmem_capacity_bytes(default=64 * 1024 * 1024):
    """Physical VMEM of the current chip; conservative fallback (v7x) otherwise."""
    try:
        info = pltpu.get_tpu_info()
        return int(getattr(info, "vmem_capacity_bytes", default))
    except Exception:
        return default


def _pick_batch_block(N, HW, C, dtype_bytes, vmem_limit_bytes):
    """Images per grid step: as big as the VMEM budget allows.

    The pipeline holds the input tile and the output tile, each double-
    buffered: per image ~= 2 (in+out) * 2 (buffers) * HW * C * dtype_bytes.
    """
    per_image = 4 * HW * C * dtype_bytes
    budget = int(vmem_limit_bytes * 0.6)             # headroom for weights etc.
    nb = max(1, min(N, budget // max(per_image, 1)))
    if N >= 2:                                       # keep >= 2 grid steps so
        nb = min(nb, max(1, N // 2))                 # both v7x TCs get work
    while N % nb:                                    # clean blocking
        nb -= 1
    return nb


def squeeze_excitation(x_nchw, w1, b1, w2, b2):
    """SE forward.

    x_nchw: (N, C, H, W); w1: (C, Cr); b1: (1, Cr); w2: (Cr, C); b2: (1, C).
    """
    N, C, H, W = x_nchw.shape
    HW = H * W
    Cr = w1.shape[1]
    dtype_bytes = jnp.dtype(x_nchw.dtype).itemsize

    # Per-generation VMEM budgeting: 3/4 of physical, capped at 96 MiB
    # (v5e/v6e: 96 MiB of 128 MiB; v7x: 48 MiB of 64 MiB).
    vmem_limit = int(min(_vmem_capacity_bytes() * 3 // 4, 96 * 1024 * 1024))
    NB = _pick_batch_block(N, HW, C, dtype_bytes, vmem_limit)

    # Lane-dense NHWC-flattened layout: channels on the lane axis of every tile.
    x_nhwc = jnp.transpose(x_nchw, (0, 2, 3, 1)).reshape(N, HW, C)

    use_mxu = (C > 128) or (Cr > 128)
    kernel = functools.partial(_se_kernel, use_mxu=use_mxu)

    cost = pl.CostEstimate(
        flops=2 * N * C * HW + 4 * N * C * Cr,
        transcendentals=N * C,
        bytes_accessed=2 * N * C * HW * dtype_bytes
        + (2 * C * Cr + C + Cr) * jnp.dtype(w1.dtype).itemsize,
    )

    out_nhwc = pl.pallas_call(
        kernel,
        out_shape=jax.ShapeDtypeStruct((N, HW, C), x_nchw.dtype),
        grid_spec=pltpu.PrefetchScalarGridSpec(
            num_scalar_prefetch=0,
            grid=(N // NB,),
            in_specs=[
                pl.BlockSpec((NB, HW, C), lambda i: (i, 0, 0)),   # x tile
                pl.BlockSpec((C, Cr), lambda i: (0, 0)),          # w1
                pl.BlockSpec((1, Cr), lambda i: (0, 0)),          # b1
                pl.BlockSpec((Cr, C), lambda i: (0, 0)),          # w2
                pl.BlockSpec((1, C), lambda i: (0, 0)),           # b2
            ],
            out_specs=pl.BlockSpec((NB, HW, C), lambda i: (i, 0, 0)),
        ),
        compiler_params=pltpu.CompilerParams(
            dimension_semantics=("parallel",),
            vmem_limit_bytes=vmem_limit,
        ),
        cost_estimate=cost,
    )(x_nhwc, w1, b1, w2, b2)

    return out_nhwc.reshape(N, H, W, C).transpose(0, 3, 1, 2)


if __name__ == "__main__":
    # Small shapes consistent with the module: B=2, C=8, H=W=16, reduction=4.
    B, C, H, W = 2, 8, 16, 16
    reduction_ratio = 4
    Cr = C // reduction_ratio

    key = jax.random.PRNGKey(0)
    kx, k1, kb1, k2, kb2 = jax.random.split(key, 5)

    x = jax.random.normal(kx, (B, C, H, W), dtype=jnp.float32)
    # Conv2d 1x1 == linear layers; w1 stored transposed for right-multiplication.
    w1 = jax.random.normal(k1, (C, Cr), dtype=jnp.float32) * 0.1
    b1 = jax.random.normal(kb1, (1, Cr), dtype=jnp.float32) * 0.1
    w2 = jax.random.normal(k2, (Cr, C), dtype=jnp.float32) * 0.1
    b2 = jax.random.normal(kb2, (1, C), dtype=jnp.float32) * 0.1

    out = squeeze_excitation(x, w1, b1, w2, b2)
    out = jax.block_until_ready(out)

    # Pure-JAX reference check.
    y = jnp.mean(x, axis=(2, 3))                          # (B, C)
    y = jnp.maximum(y @ w1 + b1, 0.0)                     # (B, Cr)
    y = jax.nn.sigmoid(y @ w2 + b2)                       # (B, C)
    ref = x * y[:, :, None, None]
    assert jnp.allclose(out, ref, atol=1e-5, rtol=1e-5), "mismatch vs reference"

    print("KERNEL_OK")
</pallas_src>

<mosaic_0001>
module attributes {stable_mosaic.version = 11 : i64} {
  func.func @_se_kernel(%arg0: i32, %arg1: memref<1x256x8xf32, #tpu.memory_space<vmem>>, %arg2: memref<8x2xf32, #tpu.memory_space<vmem>>, %arg3: memref<1x2xf32, #tpu.memory_space<vmem>>, %arg4: memref<2x8xf32, #tpu.memory_space<vmem>>, %arg5: memref<1x8xf32, #tpu.memory_space<vmem>>, %arg6: memref<1x256x8xf32, #tpu.memory_space<vmem>>) attributes {dimension_semantics = [#tpu.dimension_semantics<parallel>], iteration_bounds = array<i64: 2>, scalar_prefetch = 0 : i64, scratch_operands = 0 : i64, tpu.core_type = #tpu.core_type<tc>, window_params = [{transform_indices = @transform_0, window_bounds = array<i64: 1, 256, 8>}, {pipeline_mode = #tpu.pipeline_mode<synchronous>, transform_indices = @transform_1, window_bounds = array<i64: 8, 2>}, {pipeline_mode = #tpu.pipeline_mode<synchronous>, transform_indices = @transform_2, window_bounds = array<i64: 1, 2>}, {pipeline_mode = #tpu.pipeline_mode<synchronous>, transform_indices = @transform_3, window_bounds = array<i64: 2, 8>}, {pipeline_mode = #tpu.pipeline_mode<synchronous>, transform_indices = @transform_4, window_bounds = array<i64: 1, 8>}, {transform_indices = @transform_5, window_bounds = array<i64: 1, 256, 8>}]} {
    %c0 = arith.constant 0 : index
    %c0_0 = arith.constant 0 : index
    %c0_1 = arith.constant 0 : index
    %0 = vector.load %arg1[%c0, %c0_0, %c0_1] : memref<1x256x8xf32, #tpu.memory_space<vmem>>, vector<1x256x8xf32>
    %cst = arith.constant dense<0.000000e+00> : vector<1x8xf32>
    %1 = vector.multi_reduction <add>, %0, %cst [1] : vector<1x256x8xf32> to vector<1x8xf32>
    %cst_2 = arith.constant 2.560000e+02 : f32
    %2 = vector.broadcast %cst_2 : f32 to vector<1x8xf32>
    %3 = arith.divf %1, %2 : vector<1x8xf32>
    %c0_3 = arith.constant 0 : index
    %c0_4 = arith.constant 0 : index
    %4 = vector.load %arg2[%c0_3, %c0_4] : memref<8x2xf32, #tpu.memory_space<vmem>>, vector<8x2xf32>
    %c0_5 = arith.constant 0 : index
    %c0_6 = arith.constant 0 : index
    %5 = vector.load %arg4[%c0_5, %c0_6] : memref<2x8xf32, #tpu.memory_space<vmem>>, vector<2x8xf32>
    %6 = vector.shape_cast %3 : vector<1x8xf32> to vector<1x8x1xf32>
    %7 = vector.shape_cast %4 : vector<8x2xf32> to vector<1x8x2xf32>
    %8 = vector.broadcast %6 : vector<1x8x1xf32> to vector<1x8x2xf32>
    %9 = arith.mulf %8, %7 : vector<1x8x2xf32>
    %cst_7 = arith.constant dense<0.000000e+00> : vector<1x2xf32>
    %10 = vector.multi_reduction <add>, %9, %cst_7 [1] : vector<1x8x2xf32> to vector<1x2xf32>
    %c0_8 = arith.constant 0 : index
    %c0_9 = arith.constant 0 : index
    %11 = vector.load %arg3[%c0_8, %c0_9] : memref<1x2xf32, #tpu.memory_space<vmem>>, vector<1x2xf32>
    %12 = arith.addf %10, %11 : vector<1x2xf32>
    %cst_10 = arith.constant 0.000000e+00 : f32
    %13 = vector.broadcast %cst_10 : f32 to vector<1x2xf32>
    %14 = arith.maximumf %12, %13 : vector<1x2xf32>
    %15 = vector.shape_cast %14 : vector<1x2xf32> to vector<1x2x1xf32>
    %16 = vector.shape_cast %5 : vector<2x8xf32> to vector<1x2x8xf32>
    %17 = vector.broadcast %15 : vector<1x2x1xf32> to vector<1x2x8xf32>
    %18 = arith.mulf %17, %16 : vector<1x2x8xf32>
    %cst_11 = arith.constant dense<0.000000e+00> : vector<1x8xf32>
    %19 = vector.multi_reduction <add>, %18, %cst_11 [1] : vector<1x2x8xf32> to vector<1x8xf32>
    %c0_12 = arith.constant 0 : index
    %c0_13 = arith.constant 0 : index
    %20 = vector.load %arg5[%c0_12, %c0_13] : memref<1x8xf32, #tpu.memory_space<vmem>>, vector<1x8xf32>
    %21 = arith.addf %19, %20 : vector<1x8xf32>
    %22 = arith.negf %21 : vector<1x8xf32>
    %23 = math.exp %22 : vector<1x8xf32>
    %cst_14 = arith.constant 1.000000e+00 : f32
    %24 = vector.broadcast %cst_14 : f32 to vector<1x8xf32>
    %25 = arith.addf %24, %23 : vector<1x8xf32>
    %26 = arith.divf %24, %25 : vector<1x8xf32>
    %c0_15 = arith.constant 0 : index
    %c0_16 = arith.constant 0 : index
    %c0_17 = arith.constant 0 : index
    %27 = vector.load %arg1[%c0_15, %c0_16, %c0_17] : memref<1x256x8xf32, #tpu.memory_space<vmem>>, vector<1x256x8xf32>
    %28 = vector.shape_cast %26 : vector<1x8xf32> to vector<1x1x8xf32>
    %29 = vector.broadcast %28 : vector<1x1x8xf32> to vector<1x256x8xf32>
    %30 = arith.mulf %27, %29 : vector<1x256x8xf32>
    %c0_18 = arith.constant 0 : index
    %c0_19 = arith.constant 0 : index
    %c0_20 = arith.constant 0 : index
    %31 = vector.load %arg6[%c0_18, %c0_19, %c0_20] : memref<1x256x8xf32, #tpu.memory_space<vmem>>, vector<1x256x8xf32>
    tpu.vector_store %arg6[%c0_18, %c0_19, %c0_20], %30 {strides = array<i32>} : memref<1x256x8xf32, #tpu.memory_space<vmem>>, vector<1x256x8xf32>,
    return
  }
  func.func @transform_0(%arg0: i32) -> (i32, i32, i32) {
    %c0_i32 = arith.constant 0 : i32
    %c0_i32_0 = arith.constant 0 : i32
    %c0_i32_1 = arith.constant 0 : i32
    return %arg0, %c0_i32, %c0_i32_0 : i32, i32, i32
  }
  func.func @transform_1(%arg0: i32) -> (i32, i32) {
    %c0_i32 = arith.constant 0 : i32
    %c0_i32_0 = arith.constant 0 : i32
    %c0_i32_1 = arith.constant 0 : i32
    return %c0_i32, %c0_i32_0 : i32, i32
  }
  func.func @transform_2(%arg0: i32) -> (i32, i32) {
    %c0_i32 = arith.constant 0 : i32
    %c0_i32_0 = arith.constant 0 : i32
    %c0_i32_1 = arith.constant 0 : i32
    return %c0_i32, %c0_i32_0 : i32, i32
  }
  func.func @transform_3(%arg0: i32) -> (i32, i32) {
    %c0_i32 = arith.constant 0 : i32
    %c0_i32_0 = arith.constant 0 : i32
    %c0_i32_1 = arith.constant 0 : i32
    return %c0_i32, %c0_i32_0 : i32, i32
  }
  func.func @transform_4(%arg0: i32) -> (i32, i32) {
    %c0_i32 = arith.constant 0 : i32
    %c0_i32_0 = arith.constant 0 : i32
    %c0_i32_1 = arith.constant 0 : i32
    return %c0_i32, %c0_i32_0 : i32, i32
  }
  func.func @transform_5(%arg0: i32) -> (i32, i32, i32) {
    %c0_i32 = arith.constant 0 : i32
    %c0_i32_0 = arith.constant 0 : i32
    %c0_i32_1 = arith.constant 0 : i32
    return %arg0, %c0_i32, %c0_i32_0 : i32, i32, i32
  }
}

</mosaic_0001>

<llo_original>
// kernel: tpu_custom_call.1
$region0: #{tpu_custom_call.1}
  #allocation0 [shape = 'u32[]', space=smem, size = 0x4, offset = 0x4, fixed_abs, tag = 'smem constant byte address 0x4 - core index']
  #allocation1 [shape = 'u32[144,128]{1,0:T(1,128)}', space=vmem, size = 0x12000, scoped, tag = 'internal scratch']
  %s0 = inlined_call_operand.vmem [shape: f32[2,256,8], index: 0, kind: input, shape index: {}]
  %s1 = inlined_call_operand.vmem [shape: f32[8,2], index: 1, kind: input, shape index: {}]
  %s2 = inlined_call_operand.vmem [shape: f32[1,2], index: 2, kind: input, shape index: {}]
  %s3 = inlined_call_operand.vmem [shape: f32[2,8], index: 3, kind: input, shape index: {}]
  %s4 = inlined_call_operand.vmem [shape: f32[1,8], index: 4, kind: input, shape index: {}]
  %s5 = inlined_call_operand.vmem [shape: f32[2,256,8], index: 5, kind: output, shape index: {}]
  %s6 = sld [smem:[#allocation0]]
  $region53: #{tpu_custom_call.1} parent=0
    _
  %s8 = ssub.s32 1, %s6
  %s9 = scalar_select 0, %s8, %s6
  loop: start=0, step=1, limit=4
  $region2: #{tpu_custom_call.1} parent=0 // loop_pre_header
    _
  $region3: #{tpu_custom_call.1} parent=0 // loop_header
    %s11 = sphi 0, %s15
    %p12 = scmp.ge.s32.totalorder %s11, 4
    %s21 = sphi 0, %s23
    %s24 = sphi 0, %s21
    %s25 = sphi 0, %s24
    %s41 = sphi 0, %s25
    %s45 = sphi 0, %s45
    %s47 = sphi 0, %s45
    %s48 = sphi 0, %s47
    %s62 = sphi 0, %s48
    %s66 = sphi 0, %s66
    %s68 = sphi 0, %s66
    %s69 = sphi 0, %s68
    %s83 = sphi 0, %s69
    %s87 = sphi 0, %s87
    %s89 = sphi 0, %s87
    %s90 = sphi 0, %s89
    %s104 = sphi 0, %s90
    %s108 = sphi 0, %s108
    %s110 = sphi 0, %s108
    %s111 = sphi 0, %s110
    %s125 = sphi 0, %s111
    %s131 = sphi 0, %s133
    %s134 = sphi 0, %s131
    %s135 = sphi 0, %s134
    %s151 = sphi 0, %s135
  $region4: #{tpu_custom_call.1} parent=0 // loop_header_branch
    %14 = sbr.rel (%p12) target = $region8
  $region5: #{tpu_custom_call.1} parent=0 // loop_body
    %s16 = ssub.s32 %s11, 1
    %s17 = ssub.s32 %s11, 2
    %s18 = sadd.s32 %s11, 1
    %s19 = ssub.s32 %s11, %s18
    %p20 = scmp.eq.s32.totalorder %s19, 0
    %s22 = sadd.s32 %s21, 1
    %s23 = scalar_select %p20, %s21, %s22
    %p26 = pneg %p20
    %p27 = scmp.eq.s32.totalorder %s11, 1
    %p28 = por %p26, %p27
    %p29 = scmp.ne.s32.totalorder %s21, %s24
    %p30 = scmp.eq.s32.totalorder %s11, 0
    %p31 = por %p29, %p30
    %p32 = scmp.ne.s32.totalorder %s21, %s24
    %p33 = scmp.eq.s32.totalorder %s16, 1
    %p34 = por %p32, %p33
    %p35 = scmp.ne.s32.totalorder %s24, %s25
    %p36 = scmp.eq.s32.totalorder %s16, 0
    %p37 = por %p35, %p36
    %p38 = scmp.ne.s32.totalorder %s24, %s25
    %p39 = scmp.eq.s32.totalorder %s17, 1
    %p40 = por %p38, %p39
    %p42 = scmp.ne.s32.totalorder %s25, %s41
    %p43 = scmp.eq.s32.totalorder %s17, 0
    %p44 = por %p42, %p43
    %s46 = sadd.s32 %s45, 1
    %p49 = scmp.eq.s32.totalorder %s11, 1
    %p50 = scmp.ne.s32.totalorder %s45, %s47
    %p51 = scmp.eq.s32.totalorder %s11, 0
    %p52 = por %p50, %p51
    %p53 = scmp.ne.s32.totalorder %s45, %s47
    %p54 = scmp.eq.s32.totalorder %s16, 1
    %p55 = por %p53, %p54
    %p56 = scmp.ne.s32.totalorder %s47, %s48
    %p57 = scmp.eq.s32.totalorder %s16, 0
    %p58 = por %p56, %p57
    %p59 = scmp.ne.s32.totalorder %s47, %s48
    %p60 = scmp.eq.s32.totalorder %s17, 1
    %p61 = por %p59, %p60
    %p63 = scmp.ne.s32.totalorder %s48, %s62
    %p64 = scmp.eq.s32.totalorder %s17, 0
    %p65 = por %p63, %p64
    %s67 = sadd.s32 %s66, 1
    %p70 = scmp.eq.s32.totalorder %s11, 1
    %p71 = scmp.ne.s32.totalorder %s66, %s68
    %p72 = scmp.eq.s32.totalorder %s11, 0
    %p73 = por %p71, %p72
    %p74 = scmp.ne.s32.totalorder %s66, %s68
    %p75 = scmp.eq.s32.totalorder %s16, 1
    %p76 = por %p74, %p75
    %p77 = scmp.ne.s32.totalorder %s68, %s69
    %p78 = scmp.eq.s32.totalorder %s16, 0
    %p79 = por %p77, %p78
    %p80 = scmp.ne.s32.totalorder %s68, %s69
    %p81 = scmp.eq.s32.totalorder %s17, 1
    %p82 = por %p80, %p81
    %p84 = scmp.ne.s32.totalorder %s69, %s83
    %p85 = scmp.eq.s32.totalorder %s17, 0
    %p86 = por %p84, %p85
    %s88 = sadd.s32 %s87, 1
    %p91 = scmp.eq.s32.totalorder %s11, 1
    %p92 = scmp.ne.s32.totalorder %s87, %s89
    %p93 = scmp.eq.s32.totalorder %s11, 0
    %p94 = por %p92, %p93
    %p95 = scmp.ne.s32.totalorder %s87, %s89
    %p96 = scmp.eq.s32.totalorder %s16, 1
    %p97 = por %p95, %p96
    %p98 = scmp.ne.s32.totalorder %s89, %s90
    %p99 = scmp.eq.s32.totalorder %s16, 0
    %p100 = por %p98, %p99
    %p101 = scmp.ne.s32.totalorder %s89, %s90
    %p102 = scmp.eq.s32.totalorder %s17, 1
    %p103 = por %p101, %p102
    %p105 = scmp.ne.s32.totalorder %s90, %s104
    %p106 = scmp.eq.s32.totalorder %s17, 0
    %p107 = por %p105, %p106
    %s109 = sadd.s32 %s108, 1
    %p112 = scmp.eq.s32.totalorder %s11, 1
    %p113 = scmp.ne.s32.totalorder %s108, %s110
    %p114 = scmp.eq.s32.totalorder %s11, 0
    %p115 = por %p113, %p114
    %p116 = scmp.ne.s32.totalorder %s108, %s110
    %p117 = scmp.eq.s32.totalorder %s16, 1
    %p118 = por %p116, %p117
    %p119 = scmp.ne.s32.totalorder %s110, %s111
    %p120 = scmp.eq.s32.totalorder %s16, 0
    %p121 = por %p119, %p120
    %p122 = scmp.ne.s32.totalorder %s110, %s111
    %p123 = scmp.eq.s32.totalorder %s17, 1
    %p124 = por %p122, %p123
    %p126 = scmp.ne.s32.totalorder %s111, %s125
    %p127 = scmp.eq.s32.totalorder %s17, 0
    %p128 = por %p126, %p127
    %s129 = ssub.s32 %s11, %s18
    %p130 = scmp.eq.s32.totalorder %s129, 0
    %s132 = sadd.s32 %s131, 1
    %s133 = scalar_select %p130, %s131, %s132
    %p136 = pneg %p130
    %p137 = scmp.eq.s32.totalorder %s11, 1
    %p138 = por %p136, %p137
    %p139 = scmp.ne.s32.totalorder %s131, %s134
    %p140 = scmp.eq.s32.totalorder %s11, 0
    %p141 = por %p139, %p140
    %p142 = scmp.ne.s32.totalorder %s131, %s134
    %p143 = scmp.eq.s32.totalorder %s16, 1
    %p144 = por %p142, %p143
    %p145 = scmp.ne.s32.totalorder %s134, %s135
    %p146 = scmp.eq.s32.totalorder %s16, 0
    %p147 = por %p145, %p146
    %p148 = scmp.ne.s32.totalorder %s134, %s135
    %p149 = scmp.eq.s32.totalorder %s17, 1
    %p150 = por %p148, %p149
    %p152 = scmp.ne.s32.totalorder %s135, %s151
    %p153 = scmp.eq.s32.totalorder %s17, 0
    %p154 = por %p152, %p153
    %p155 = scmp.le.s32.totalorder 1, %s11
    %p156 = scmp.lt.s32.totalorder %s11, 3
    %p157 = pnand %p155, %p156
    %p158 = pneg %p157
    // Predicated region
    $region9: #{tpu_custom_call.1} parent=5 // pred_check
      _
    $region10: #{tpu_custom_call.1} parent=5 // pred_check_branch
      %160 = sbr.rel (%p157) target = $region12
    $region11: #{tpu_custom_call.1} parent=5 // pred_region
      %s161 = ssub.s32 %s11, 1
      // Predicated region
      $region13: #{tpu_custom_call.1} parent=11 // pred_check
        %p162 = pneg %p58
      $region14: #{tpu_custom_call.1} parent=11 // pred_check_branch
        %164 = sbr.rel (%p162) target = $region16
      $region15: #{tpu_custom_call.1} parent=11 // pred_region
        _
      $region16: #{tpu_custom_call.1} parent=11 // pred_fallthru
        _
      // Predicated region
      $region17: #{tpu_custom_call.1} parent=11 // pred_check
        %p165 = pneg %p79
      $region18: #{tpu_custom_call.1} parent=11 // pred_check_branch
        %167 = sbr.rel (%p165) target = $region20
      $region19: #{tpu_custom_call.1} parent=11 // pred_region
        _
      $region20: #{tpu_custom_call.1} parent=11 // pred_fallthru
        _
      // Predicated region
      $region21: #{tpu_custom_call.1} parent=11 // pred_check
        %p168 = pneg %p100
      $region22: #{tpu_custom_call.1} parent=11 // pred_check_branch
        %170 = sbr.rel (%p168) target = $region24
      $region23: #{tpu_custom_call.1} parent=11 // pred_region
        _
      $region24: #{tpu_custom_call.1} parent=11 // pred_fallthru
        _
      // Predicated region
      $region25: #{tpu_custom_call.1} parent=11 // pred_check
        %p171 = pneg %p121
      $region26: #{tpu_custom_call.1} parent=11 // pred_check_branch
        %173 = sbr.rel (%p171) target = $region28
      $region27: #{tpu_custom_call.1} parent=11 // pred_region
        _
      $region28: #{tpu_custom_call.1} parent=11 // pred_fallthru
        _
    $region12: #{tpu_custom_call.1} parent=5 // pred_fallthru
      _
    %p174 = scmp.lt.s32.totalorder %s11, 2
    // Predicated region
    $region29: #{tpu_custom_call.1} parent=5 // pred_check
      %p175 = pneg %p174
    $region30: #{tpu_custom_call.1} parent=5 // pred_check_branch
      %177 = sbr.rel (%p175) target = $region32
    $region31: #{tpu_custom_call.1} parent=5 // pred_region
      // Predicated region
      $region33: #{tpu_custom_call.1} parent=31 // pred_check
        %p178 = pneg %p31
      $region34: #{tpu_custom_call.1} parent=31 // pred_check_branch
        %180 = sbr.rel (%p178) target = $region36
      $region35: #{tpu_custom_call.1} parent=31 // pred_region
        %p181 = scmp.lt.s32.totalorder %s11, 1
        %s182 = scalar_select %p181, %s11, 1
        %s183 = smul.addr %s182, 32
        %s184 = smul.addr %s183, 8
        %s185 = scalar_lea.vmem %s0, %s184
      $region36: #{tpu_custom_call.1} parent=31 // pred_fallthru
        _
    $region32: #{tpu_custom_call.1} parent=5 // pred_fallthru
      _
    %p186 = scmp.le.s32.totalorder 1, %s11
    %p187 = scmp.lt.s32.totalorder %s11, 3
    %p188 = pnand %p186, %p187
    %p189 = pneg %p188
    // Predicated region
    $region37: #{tpu_custom_call.1} parent=5 // pred_check
      _
    $region38: #{tpu_custom_call.1} parent=5 // pred_check_branch
      %191 = sbr.rel (%p188) target = $region40
    $region39: #{tpu_custom_call.1} parent=5 // pred_region
      %s192 = ssub.s32 %s11, 1
      %p193 = scmp.lt.s32.totalorder %s16, 1
      %s194 = scalar_select %p193, %s16, 1
      %s195 = smul.addr %s194, 32
      %s196 = smul.addr %s195, 8
      %s197 = scalar_lea.vmem %s0, %s196
      %p198 = pneg %p37
      %p199 = pneg %p34
      %p200 = pneg %p58
      %p201 = pneg %p55
      %p202 = pneg %p79
      %p203 = pneg %p76
      %p204 = pneg %p100
      %p205 = pneg %p97
      %p206 = pneg %p121
      %p207 = pneg %p118
      %p208 = pneg %p147
      %p209 = pneg %p144
      %p210 = scmp.lt.s32.totalorder %s16, 1
      %s211 = scalar_select %p210, %s16, 1
      %s212 = smul.addr %s211, 32
      %s213 = smul.addr %s212, 8
      %s214 = scalar_lea.vmem %s5, %s213
      %p215 = scmp.lt.s32.totalorder %s16, 1
      %s216 = scalar_select %p215, %s16, 1
      %s217 = smul.addr %s216, 32
      %s218 = smul.addr %s217, 8
      %s219 = scalar_lea.vmem %s0, %s218
      %p220 = scmp.lt.s32.totalorder %s16, 1
      %s221 = scalar_select %p220, %s16, 1
      %s222 = smul.addr %s221, 32
      %s223 = smul.addr %s222, 8
      %s224 = scalar_lea.vmem %s5, %s223
      %v225 = vld [vmem:[%s219] sm:$0xff]
      %v226 = vld [vmem:[%s219 + $0x8] sm:$0xff]
      %v227 = vld [vmem:[%s219 + $0x10] sm:$0xff]
      %v228 = vld [vmem:[%s219 + $0x18] sm:$0xff]
      %v229 = vld [vmem:[%s219 + $0x20] sm:$0xff]
      %v230 = vld [vmem:[%s219 + $0x28] sm:$0xff]
      %v231 = vld [vmem:[%s219 + $0x30] sm:$0xff]
      %v232 = vld [vmem:[%s219 + $0x38] sm:$0xff]
      %v233 = vld [vmem:[%s219 + $0x40] sm:$0xff]
      %v234 = vld [vmem:[%s219 + $0x48] sm:$0xff]
      %v235 = vld [vmem:[%s219 + $0x50] sm:$0xff]
      %v236 = vld [vmem:[%s219 + $0x58] sm:$0xff]
      %v237 = vld [vmem:[%s219 + $0x60] sm:$0xff]
      %v238 = vld [vmem:[%s219 + $0x68] sm:$0xff]
      %v239 = vld [vmem:[%s219 + $0x70] sm:$0xff]
      %v240 = vld [vmem:[%s219 + $0x78] sm:$0xff]
      %v241 = vld [vmem:[%s219 + $0x80] sm:$0xff]
      %v242 = vld [vmem:[%s219 + $0x88] sm:$0xff]
      %v243 = vld [vmem:[%s219 + $0x90] sm:$0xff]
      %v244 = vld [vmem:[%s219 + $0x98] sm:$0xff]
      %v245 = vld [vmem:[%s219 + $0xa0] sm:$0xff]
      %v246 = vld [vmem:[%s219 + $0xa8] sm:$0xff]
      %v247 = vld [vmem:[%s219 + $0xb0] sm:$0xff]
      %v248 = vld [vmem:[%s219 + $0xb8] sm:$0xff]
      %v249 = vld [vmem:[%s219 + $0xc0] sm:$0xff]
      %v250 = vld [vmem:[%s219 + $0xc8] sm:$0xff]
      %v251 = vld [vmem:[%s219 + $0xd0] sm:$0xff]
      %v252 = vld [vmem:[%s219 + $0xd8] sm:$0xff]
      %v253 = vld [vmem:[%s219 + $0xe0] sm:$0xff]
      %v254 = vld [vmem:[%s219 + $0xe8] sm:$0xff]
      %v255 = vld [vmem:[%s219 + $0xf0] sm:$0xff]
      %v256 = vld [vmem:[%s219 + $0xf8] sm:$0xff]
      %vm257 = vcmask 64512
      %v258 = vsel %vm257, %v225, 0.0
      %v259 = vsel %vm257, %v226, 0.0
      %v260 = vadd.f32 %v258, %v259
      %v261 = vsel %vm257, %v227, 0.0
      %v262 = vadd.f32 %v260, %v261
      %v263 = vsel %vm257, %v228, 0.0
      %v264 = vadd.f32 %v262, %v263
      %v265 = vsel %vm257, %v229, 0.0
      %v266 = vadd.f32 %v264, %v265
      %v267 = vsel %vm257, %v230, 0.0
      %v268 = vadd.f32 %v266, %v267
      %v269 = vsel %vm257, %v231, 0.0
      %v270 = vadd.f32 %v268, %v269
      %v271 = vsel %vm257, %v232, 0.0
      %v272 = vadd.f32 %v270, %v271
      %v273 = vsel %vm257, %v233, 0.0
      %v274 = vadd.f32 %v272, %v273
      %v275 = vsel %vm257, %v234, 0.0
      %v276 = vadd.f32 %v274, %v275
      %v277 = vsel %vm257, %v235, 0.0
      %v278 = vadd.f32 %v276, %v277
      %v279 = vsel %vm257, %v236, 0.0
      %v280 = vadd.f32 %v278, %v279
      %v281 = vsel %vm257, %v237, 0.0
      %v282 = vadd.f32 %v280, %v281
      %v283 = vsel %vm257, %v238, 0.0
      %v284 = vadd.f32 %v282, %v283
      %v285 = vsel %vm257, %v239, 0.0
      %v286 = vadd.f32 %v284, %v285
      %v287 = vsel %vm257, %v240, 0.0
      %v288 = vadd.f32 %v286, %v287
      %v289 = vsel %vm257, %v241, 0.0
      %v290 = vadd.f32 %v288, %v289
      %v291 = vsel %vm257, %v242, 0.0
      %v292 = vadd.f32 %v290, %v291
      %v293 = vsel %vm257, %v243, 0.0
      %v294 = vadd.f32 %v292, %v293
      %v295 = vsel %vm257, %v244, 0.0
      %v296 = vadd.f32 %v294, %v295
      %v297 = vsel %vm257, %v245, 0.0
      %v298 = vadd.f32 %v296, %v297
      %v299 = vsel %vm257, %v246, 0.0
      %v300 = vadd.f32 %v298, %v299
      %v301 = vsel %vm257, %v247, 0.0
      %v302 = vadd.f32 %v300, %v301
      %v303 = vsel %vm257, %v248, 0.0
      %v304 = vadd.f32 %v302, %v303
      %v305 = vsel %vm257, %v249, 0.0
      %v306 = vadd.f32 %v304, %v305
      %v307 = vsel %vm257, %v250, 0.0
      %v308 = vadd.f32 %v306, %v307
      %v309 = vsel %vm257, %v251, 0.0
      %v310 = vadd.f32 %v308, %v309
      %v311 = vsel %vm257, %v252, 0.0
      %v312 = vadd.f32 %v310, %v311
      %v313 = vsel %vm257, %v253, 0.0
      %v314 = vadd.f32 %v312, %v313
      %v315 = vsel %vm257, %v254, 0.0
      %v316 = vadd.f32 %v314, %v315
      %v317 = vsel %vm257, %v255, 0.0
      %v318 = vadd.f32 %v316, %v317
      %v319 = vsel %vm257, %v256, 0.0
      %v320 = vadd.f32 %v318, %v319
      %v321 = vrot.slane %v320, 4
      %v322 = vadd.f32 %v320, %v321
      %v323 = vrot.slane %v322, 2
      %v324 = vadd.f32 %v322, %v323
      %v325 = vrot.slane %v324, 1
      %v326 = vadd.f32 %v324, %v325
      %v327 = vrcp.pop 256.0
      %v328 = vmul.f32 %v326, %v327
      %v329 = vld [vmem:[%s1] sm:$0xff]
      %v330 = vld [vmem:[%s3] sm:$0x3]
      %332 = vbcast.lane.b32.xlu0 %v328, 256
      %v333 = vpop.permute.xlu0 %332
      %v334 = vmul.f32 %v333, %v329
      %vm335 = vcmask 15360
      %v336 = vsel %vm335, %v334, 0.0
      %v337 = vrot.slane %v336, 4
      %v338 = vadd.f32 %v336, %v337
      %v339 = vrot.slane %v338, 2
      %v340 = vadd.f32 %v338, %v339
      %v341 = vrot.slane %v340, 1
      %v342 = vadd.f32 %v340, %v341
      %v343 = vld [vmem:[%s2] sm:$0x1]
      %v344 = vadd.f32 %v342, %v343
      %v345 = vmax.f32 %v344, 0.0
      %v346 = vlaneseq
      %v347 = vshrl.u32 %v346, 7
      %v348 = vsub.s32 0, %v347
      %v349 = vrot.slane %v345, %v348
      %351 = vbcast.lane.b32.xlu0 %v349, 256
      %v352 = vpop.permute.xlu0 %351
      %v353 = vmul.f32 %v352, %v330
      %vm354 = vcmask 58368
      %v355 = vsel %vm354, %v353, 0.0
      %v356 = vrot.slane %v355, 4
      %v357 = vadd.f32 %v355, %v356
      %v358 = vrot.slane %v357, 2
      %v359 = vadd.f32 %v357, %v358
      %v360 = vrot.slane %v359, 1
      %v361 = vadd.f32 %v359, %v360
      %v362 = vld [vmem:[%s4] sm:$0x1]
      %v363 = vadd.f32 %v361, %v362
      %v364 = vxor.u32 %v363, 2147483648
      %v365 = vmul.f32 %v364, 1.442695
      %v366 = vpow.pop %v365
      %v367 = vadd.f32 %v366, 1.0
      %v368 = vrcp.pop %v367
      %v369 = vmul.f32 1.0, %v368
      %v370 = vlaneseq
      %v371 = vshrl.u32 %v370, 7
      %v372 = vsub.s32 0, %v371
      %v373 = vrot.slane %v369, %v372
      %v374 = vmul.f32 %v225, %v373
      %v375 = vmul.f32 %v226, %v373
      %v376 = vmul.f32 %v227, %v373
      %v377 = vmul.f32 %v228, %v373
      %v378 = vmul.f32 %v229, %v373
      %v379 = vmul.f32 %v230, %v373
      %v380 = vmul.f32 %v231, %v373
      %v381 = vmul.f32 %v232, %v373
      %v382 = vmul.f32 %v233, %v373
      %v383 = vmul.f32 %v234, %v373
      %v384 = vmul.f32 %v235, %v373
      %v385 = vmul.f32 %v236, %v373
      %v386 = vmul.f32 %v237, %v373
      %v387 = vmul.f32 %v238, %v373
      %v388 = vmul.f32 %v239, %v373
      %v389 = vmul.f32 %v240, %v373
      %v390 = vmul.f32 %v241, %v373
      %v391 = vmul.f32 %v242, %v373
      %v392 = vmul.f32 %v243, %v373
      %v393 = vmul.f32 %v244, %v373
      %v394 = vmul.f32 %v245, %v373
      %v395 = vmul.f32 %v246, %v373
      %v396 = vmul.f32 %v247, %v373
      %v397 = vmul.f32 %v248, %v373
      %v398 = vmul.f32 %v249, %v373
      %v399 = vmul.f32 %v250, %v373
      %v400 = vmul.f32 %v251, %v373
      %v401 = vmul.f32 %v252, %v373
      %v402 = vmul.f32 %v253, %v373
      %v403 = vmul.f32 %v254, %v373
      %v404 = vmul.f32 %v255, %v373
      %v405 = vmul.f32 %v256, %v373
      %406 = vst.msk [vmem:[%s224] sm:$0xff] %vm257, %v374
      %407 = vst.msk [vmem:[%s224 + $0x8] sm:$0xff] %vm257, %v375
      %408 = vst.msk [vmem:[%s224 + $0x10] sm:$0xff] %vm257, %v376
      %409 = vst.msk [vmem:[%s224 + $0x18] sm:$0xff] %vm257, %v377
      %410 = vst.msk [vmem:[%s224 + $0x20] sm:$0xff] %vm257, %v378
      %411 = vst.msk [vmem:[%s224 + $0x28] sm:$0xff] %vm257, %v379
      %412 = vst.msk [vmem:[%s224 + $0x30] sm:$0xff] %vm257, %v380
      %413 = vst.msk [vmem:[%s224 + $0x38] sm:$0xff] %vm257, %v381
      %414 = vst.msk [vmem:[%s224 + $0x40] sm:$0xff] %vm257, %v382
      %415 = vst.msk [vmem:[%s224 + $0x48] sm:$0xff] %vm257, %v383
      %416 = vst.msk [vmem:[%s224 + $0x50] sm:$0xff] %vm257, %v384
      %417 = vst.msk [vmem:[%s224 + $0x58] sm:$0xff] %vm257, %v385
      %418 = vst.msk [vmem:[%s224 + $0x60] sm:$0xff] %vm257, %v386
      %419 = vst.msk [vmem:[%s224 + $0x68] sm:$0xff] %vm257, %v387
      %420 = vst.msk [vmem:[%s224 + $0x70] sm:$0xff] %vm257, %v388
      %421 = vst.msk [vmem:[%s224 + $0x78] sm:$0xff] %vm257, %v389
      %422 = vst.msk [vmem:[%s224 + $0x80] sm:$0xff] %vm257, %v390
      %423 = vst.msk [vmem:[%s224 + $0x88] sm:$0xff] %vm257, %v391
      %424 = vst.msk [vmem:[%s224 + $0x90] sm:$0xff] %vm257, %v392
      %425 = vst.msk [vmem:[%s224 + $0x98] sm:$0xff] %vm257, %v393
      %426 = vst.msk [vmem:[%s224 + $0xa0] sm:$0xff] %vm257, %v394
      %427 = vst.msk [vmem:[%s224 + $0xa8] sm:$0xff] %vm257, %v395
      %428 = vst.msk [vmem:[%s224 + $0xb0] sm:$0xff] %vm257, %v396
      %429 = vst.msk [vmem:[%s224 + $0xb8] sm:$0xff] %vm257, %v397
      %430 = vst.msk [vmem:[%s224 + $0xc0] sm:$0xff] %vm257, %v398
      %431 = vst.msk [vmem:[%s224 + $0xc8] sm:$0xff] %vm257, %v399
      %432 = vst.msk [vmem:[%s224 + $0xd0] sm:$0xff] %vm257, %v400
      %433 = vst.msk [vmem:[%s224 + $0xd8] sm:$0xff] %vm257, %v401
      %434 = vst.msk [vmem:[%s224 + $0xe0] sm:$0xff] %vm257, %v402
      %435 = vst.msk [vmem:[%s224 + $0xe8] sm:$0xff] %vm257, %v403
      %436 = vst.msk [vmem:[%s224 + $0xf0] sm:$0xff] %vm257, %v404
      %437 = vst.msk [vmem:[%s224 + $0xf8] sm:$0xff] %vm257, %v405
      %p438 = scmp.lt.s32.totalorder %s16, 1
      %s439 = scalar_select %p438, %s16, 1
      %s440 = smul.addr %s439, 32
      %s441 = smul.addr %s440, 8
      %s442 = scalar_lea.vmem %s5, %s441
      // Predicated region
      $region41: #{tpu_custom_call.1} parent=39 // pred_check
        %p443 = pneg %p144
      $region42: #{tpu_custom_call.1} parent=39 // pred_check_branch
        %445 = sbr.rel (%p443) target = $region44
      $region43: #{tpu_custom_call.1} parent=39 // pred_region
        _
      $region44: #{tpu_custom_call.1} parent=39 // pred_fallthru
        _
    $region40: #{tpu_custom_call.1} parent=5 // pred_fallthru
      _
    %p446 = scmp.le.s32.totalorder 2, %s11
    // Predicated region
    $region45: #{tpu_custom_call.1} parent=5 // pred_check
      %p447 = pneg %p446
    $region46: #{tpu_custom_call.1} parent=5 // pred_check_branch
      %449 = sbr.rel (%p447) target = $region48
    $region47: #{tpu_custom_call.1} parent=5 // pred_region
      %s450 = ssub.s32 %s11, 2
      // Predicated region
      $region49: #{tpu_custom_call.1} parent=47 // pred_check
        %p451 = pneg %p150
      $region50: #{tpu_custom_call.1} parent=47 // pred_check_branch
        %453 = sbr.rel (%p451) target = $region52
      $region51: #{tpu_custom_call.1} parent=47 // pred_region
        %p454 = scmp.lt.s32.totalorder %s17, 1
        %s455 = scalar_select %p454, %s17, 1
        %s456 = smul.addr %s455, 32
        %s457 = smul.addr %s456, 8
        %s458 = scalar_lea.vmem %s5, %s457
      $region52: #{tpu_custom_call.1} parent=47 // pred_fallthru
        _
    $region48: #{tpu_custom_call.1} parent=5 // pred_fallthru
      _
  $region6: #{tpu_custom_call.1} parent=0 // loop_footer
    %s15 = sadd.s32 1, %s11
  $region7: #{tpu_custom_call.1} parent=0 // loop_footer_branch
    %10 = sbr.rel target = $region3
  $region8: #{tpu_custom_call.1} parent=0 // loop_exit
    _

</llo_original>
